<compile_context>
chip_gen: v5e
topology: v5e:2x2
jax: 0.10.0
libtpu: 0.0.40
codegen_flags: <defaults>
</compile_context>

<pallas_src>
import jax
import jax.numpy as jnp
from jax.experimental import pallas as pl
from jax.experimental.pallas import tpu as pltpu

VMEM_SPEC = pl.BlockSpec(memory_space=pltpu.MemorySpace.VMEM)


def _conv_padding(k):
    """Padding the PyTorch module constructs: symmetric k//2 for odd kernels,
    asymmetric (k//2 - 1, k//2) for even kernels ("same" output length).
    NOTE: for even k the module passes a 2-tuple to nn.Conv1d; we implement the
    module's evident intent (length-preserving padding)."""
    return (k // 2 - 1, k // 2) if k % 2 == 0 else (k // 2, k // 2)


# ---------------------------------------------------------------------------
# Fused forward pass (single pallas_call)
# ---------------------------------------------------------------------------

def cnn1d_forward_pallas(x, convs, fcs, last, kernel_sizes, maxpool_size, class_size):
    """x: (B, seqlen, feat) -- same data as the PyTorch module's forward() input.

    convs: list of (w (C_out, C_in, K), b (C_out,))  -- PyTorch Conv1d layout
    fcs:   list of (w (out, in), b (out,))           -- PyTorch Linear layout
    last:  (w (class_size, in), b (class_size,))
    """
    x = x.astype(jnp.float32)
    B, L0, C0 = x.shape
    pool = maxpool_size
    n_conv = len(convs)
    n_fc = len(fcs)
    assert n_fc >= 1, "module always has at least one fc layer"

    # ---- static per-conv-layer configuration --------------------------------
    cfgs = []
    L_in, C_in = L0, C0
    for (w, _), k in zip(convs, kernel_sizes):
        C_out = w.shape[0]
        pad_l, pad_r = _conv_padding(k)
        L_pad = L_in + pad_l + pad_r
        L_out = L_pad - k + 1                 # == L_in ("same" length)
        l_p = L_out // pool                   # MaxPool1d floor semantics
        l_keep = l_p * pool
        cfgs.append(dict(K=k, pad_l=pad_l, pad_r=pad_r, L_in=L_in, L_pad=L_pad,
                         L_out=L_out, l_keep=l_keep, l_p=l_p, C_in=C_in, C_out=C_out))
        L_in, C_in = l_p, C_out
    l_p_last, C_last = L_in, C_in
    flat = l_p_last * C_last

    # ---- host-side (one-time) weight re-layout ------------------------------
    # Conv weights: (C_out, C_in, K) -> im2col (K*C_in, C_out) matching the slab's
    # column order (k*C_in + c).  bf16 MXU operands, f32 biases.
    conv_ws = [jnp.transpose(w, (2, 1, 0)).reshape(-1, w.shape[0]).astype(jnp.bfloat16)
               for w, _ in convs]
    conv_bs = [bb.reshape(1, -1).astype(jnp.float32) for _, bb in convs]

    w1, b1 = fcs[0]
    fc1 = w1.shape[0]
    assert w1.shape[1] == flat
    # PyTorch flattens NCW (feature = c*l_p + l); the kernel builds channels-last
    # columns (feature = l*C_last + c), so fold the permutation into the weight:
    #   w1p[l*C + c, o] = w1[o, c*l_p + l]
    w1p = (jnp.transpose(w1.reshape(fc1, C_last, l_p_last), (2, 1, 0))
           .reshape(flat, fc1).astype(jnp.bfloat16))
    b1_2d = b1.reshape(1, fc1).astype(jnp.float32)

    fc_rest = [(jnp.transpose(w).astype(jnp.bfloat16),
                bb.reshape(1, -1).astype(jnp.float32)) for w, bb in fcs[1:]]
    wl, bl = last
    wl_t = jnp.transpose(wl).astype(jnp.bfloat16)
    bl_2d = bl.reshape(1, -1).astype(jnp.float32)

    # ---- the fused kernel ----------------------------------------------------
    def kernel(*refs):
        idx = 0
        x_ref = refs[idx]; idx += 1
        conv_refs = []
        for _ in range(n_conv):
            conv_refs.append((refs[idx], refs[idx + 1])); idx += 2
        w1_ref, b1_ref = refs[idx], refs[idx + 1]; idx += 2
        fc_refs = []
        for _ in range(n_fc - 1):
            fc_refs.append((refs[idx], refs[idx + 1])); idx += 2
        wl_ref, bl_ref = refs[idx], refs[idx + 1]; idx += 2
        out_ref = refs[idx]; idx += 1
        pad_refs = list(refs[idx: idx + n_conv]); idx += n_conv     # (B*L_pad, C_in)
        prepool_refs = list(refs[idx: idx + n_conv]); idx += n_conv  # (B*L_out, C_out)

        # Zero ONLY the padding borders; interior rows are fully overwritten below.
        for i, cfg in enumerate(cfgs):
            pad_l, pad_r = cfg["pad_l"], cfg["pad_r"]
            L_pad, L_i, C_i = cfg["L_pad"], cfg["L_in"], cfg["C_in"]
            for b in range(B):
                if pad_l > 0:
                    pad_refs[i][pl.ds(b * L_pad, pad_l), :] = (
                        jnp.zeros((pad_l, C_i), jnp.float32))
                if pad_r > 0:
                    pad_refs[i][pl.ds(b * L_pad + pad_l + L_i, pad_r), :] = (
                        jnp.zeros((pad_r, C_i), jnp.float32))

        h = x_ref[...]                     # (B*L0, C0), batch-major rows, f32
        hf = None                          # (B, flat) FC1 input, built by last layer
        for i, cfg in enumerate(cfgs):
            K = cfg["K"]; pad_l = cfg["pad_l"]; L_i = cfg["L_in"]
            L_pad = cfg["L_pad"]; L_out = cfg["L_out"]
            l_p = cfg["l_p"]; C_o = cfg["C_out"]
            w_ref, bia_ref = conv_refs[i]
            pad_ref = pad_refs[i]
            pre_ref = prepool_refs[i]

            # "same" padding: write the interior rows (borders are already zero).
            for b in range(B):
                pad_ref[pl.ds(b * L_pad + pad_l, L_i), :] = h[b * L_i:(b + 1) * L_i, :]

            # im2col over the K taps; batch folded into M -> ONE MXU matmul / layer.
            slabs = []
            for b in range(B):
                taps = [pad_ref[pl.ds(b * L_pad + k, L_out), :] for k in range(K)]
                slabs.append(jnp.concatenate(taps, axis=-1))        # (L_out, K*C_in)
            slab = jnp.concatenate(slabs, axis=0) if B > 1 else slabs[0]
            acc = jnp.dot(slab.astype(jnp.bfloat16), w_ref[...],
                          preferred_element_type=jnp.float32)        # (B*L_out, C_o)
            hc = jnp.maximum(acc + bia_ref[...], 0.0)                 # bias + ReLU (f32)

            # Fused MaxPool1d(pool, pool): one store + strided reads of pre-pool rows.
            pre_ref[...] = hc
            if i == n_conv - 1:
                # Last conv layer: gather the pooled activation directly into the
                # channels-last flattened (B, l_p*C) FC1 slab (column = l*C + c),
                # so FC1 becomes a single (B, flat) x (flat, fc1) matmul.
                cols = []
                for l in range(l_p):
                    r = pre_ref[pl.ds(l * pool, B, stride=L_out), :]       # (B, C_o)
                    for p in range(1, pool):
                        r = jnp.maximum(
                            r, pre_ref[pl.ds(l * pool + p, B, stride=L_out), :])
                    cols.append(r)
                hf = jnp.concatenate(cols, axis=-1) if l_p > 1 else cols[0]
            else:
                if L_out % pool == 0:
                    # Strides line up across batch blocks: pool the whole batch at once.
                    r = pre_ref[pl.ds(0, B * l_p, stride=pool), :]
                    for p in range(1, pool):
                        r = jnp.maximum(r, pre_ref[pl.ds(p, B * l_p, stride=pool), :])
                    h = r                                             # (B*l_p, C_o)
                else:
                    rows = []
                    for b in range(B):
                        r = pre_ref[pl.ds(b * L_out, l_p, stride=pool), :]
                        for p in range(1, pool):
                            r = jnp.maximum(
                                r, pre_ref[pl.ds(b * L_out + p, l_p, stride=pool), :])
                        rows.append(r)
                    h = jnp.concatenate(rows, axis=0)

        # FC stack (nn.Dropout = identity at inference), all batched matmuls.
        z = jnp.maximum(
            jnp.dot(hf.astype(jnp.bfloat16), w1_ref[...],
                    preferred_element_type=jnp.float32) + b1_ref[...], 0.0)
        for wr, br in fc_refs:
            z = jnp.maximum(
                jnp.dot(z.astype(jnp.bfloat16), wr[...],
                        preferred_element_type=jnp.float32) + br[...], 0.0)
        logits = jnp.dot(z.astype(jnp.bfloat16), wl_ref[...],
                         preferred_element_type=jnp.float32) + bl_ref[...]
        if class_size > 1:
            m = jnp.max(logits, axis=-1, keepdims=True)
            e = jnp.exp(logits - m)
            probs = e * pl.reciprocal(jnp.sum(e, axis=-1, keepdims=True), approx=True)
        else:
            probs = logits
        out_ref[...] = probs

    inputs = [x.reshape(B * L0, C0)]
    for w, bb in zip(conv_ws, conv_bs):
        inputs += [w, bb]
    inputs += [w1p, b1_2d]
    for w, bb in fc_rest:
        inputs += [w, bb]
    inputs += [wl_t, bl_2d]

    scratch_shapes = (
        [pltpu.VMEM((B * c["L_pad"], c["C_in"]), jnp.float32) for c in cfgs]
        + [pltpu.VMEM((B * c["L_out"], c["C_out"]), jnp.float32) for c in cfgs]
    )

    return pl.pallas_call(
        kernel,
        in_specs=[VMEM_SPEC] * len(inputs),
        out_specs=VMEM_SPEC,
        out_shape=jax.ShapeDtypeStruct((B, class_size), jnp.float32),
        scratch_shapes=scratch_shapes,
        compiler_params=pltpu.CompilerParams(vmem_limit_bytes=32 * 1024 * 1024),
    )(*inputs)


# ---------------------------------------------------------------------------
# Parameter init (mimics PyTorch default uniform(-1/sqrt(fan_in), ...))
# ---------------------------------------------------------------------------

def init_params(key, input_shape, class_size, hidden_sizes, kernel_sizes,
                maxpool_size, fc_sizes):
    _, seqlen, feat = input_shape
    convs, c_in = [], feat
    for h, k in zip(hidden_sizes, kernel_sizes):
        key, k1, k2 = jax.random.split(key, 3)
        bound = 1.0 / float(c_in * k) ** 0.5
        w = jax.random.uniform(k1, (h, c_in, k), jnp.float32, -bound, bound)
        b = jax.random.uniform(k2, (h,), jnp.float32, -bound, bound)
        convs.append((w, b))
        c_in = h
        seqlen = seqlen // maxpool_size
    fcs, in_size = [], seqlen * hidden_sizes[-1]
    for f in fc_sizes:
        key, k1, k2 = jax.random.split(key, 3)
        bound = 1.0 / float(in_size) ** 0.5
        w = jax.random.uniform(k1, (f, in_size), jnp.float32, -bound, bound)
        b = jax.random.uniform(k2, (f,), jnp.float32, -bound, bound)
        fcs.append((w, b))
        in_size = f
    key, k1, k2 = jax.random.split(key, 3)
    bound = 1.0 / float(in_size) ** 0.5
    last_w = jax.random.uniform(k1, (class_size, in_size), jnp.float32, -bound, bound)
    last_b = jax.random.uniform(k2, (class_size,), jnp.float32, -bound, bound)
    return convs, fcs, (last_w, last_b)


# ---------------------------------------------------------------------------
# Pure-jnp f32 reference mirroring the PyTorch forward (for correctness check)
# ---------------------------------------------------------------------------

def forward_reference(x, convs, fcs, last, kernel_sizes, maxpool_size, class_size):
    h = x
    for (w, b), k in zip(convs, kernel_sizes):
        pad = _conv_padding(k)
        x_pad = jnp.pad(h, ((0, 0), (pad[0], pad[1]), (0, 0)))
        l_out = x_pad.shape[1] - k + 1
        w_kcio = jnp.transpose(w, (2, 1, 0))
        acc = jnp.zeros((h.shape[0], l_out, w.shape[0]), jnp.float32)
        for kk in range(k):
            acc = acc + jnp.einsum('blc,co->blo', x_pad[:, kk:kk + l_out, :], w_kcio[kk])
        h = jnp.maximum(acc + b[None, None, :], 0.0)
        l_p = l_out // maxpool_size
        h = h[:, :l_p * maxpool_size, :].reshape(h.shape[0], l_p, maxpool_size, -1).max(axis=2)
    b_dim = h.shape[0]
    h = jnp.transpose(h, (0, 2, 1)).reshape(b_dim, -1)   # PyTorch flatten on NCW
    for w, b in fcs:
        h = jnp.maximum(h @ w.T + b, 0.0)
    w, b = last
    h = h @ w.T + b
    if class_size > 1:
        h = jax.nn.softmax(h, axis=1)
    return h


if __name__ == "__main__":
    # Small config consistent with the module:
    #   input_shape = (batch=2, seqlen=16, features=4)
    #   hidden_sizes=[8,16], kernel_sizes=[3,4], maxpool_size=2,
    #   fc_sizes=[32], class_size=3, droprate=0.5 (identity at inference)
    input_shape = (2, 16, 4)
    class_size = 3
    hidden_sizes = [8, 16]
    kernel_sizes = [3, 4]
    maxpool_size = 2
    fc_sizes = [32]

    key = jax.random.PRNGKey(0)
    key, xkey, pkey = jax.random.split(key, 3)
    x = jax.random.normal(xkey, input_shape, jnp.float32)

    convs, fcs, last = init_params(pkey, input_shape, class_size, hidden_sizes,
                                   kernel_sizes, maxpool_size, fc_sizes)

    out = cnn1d_forward_pallas(x, convs, fcs, last, kernel_sizes, maxpool_size,
                               class_size)
    out = jax.block_until_ready(out)

    ref = forward_reference(x, convs, fcs, last, kernel_sizes, maxpool_size,
                            class_size)
    assert out.shape == (input_shape[0], class_size)
    # bf16 MXU operands vs. the f32 reference -> loosened tolerance.
    assert jnp.allclose(out, ref, atol=2e-2, rtol=2e-2), "Pallas output mismatch"

    print("KERNEL_OK")
</pallas_src>

<mosaic_0001>
module attributes {stable_mosaic.version = 11 : i64} {
  func.func @kernel(%arg0: memref<32x4xf32, #tpu.memory_space<vmem>>, %arg1: memref<12x8xbf16, #tpu.memory_space<vmem>>, %arg2: memref<1x8xf32, #tpu.memory_space<vmem>>, %arg3: memref<32x16xbf16, #tpu.memory_space<vmem>>, %arg4: memref<1x16xf32, #tpu.memory_space<vmem>>, %arg5: memref<64x32xbf16, #tpu.memory_space<vmem>>, %arg6: memref<1x32xf32, #tpu.memory_space<vmem>>, %arg7: memref<32x3xbf16, #tpu.memory_space<vmem>>, %arg8: memref<1x3xf32, #tpu.memory_space<vmem>>, %arg9: memref<2x3xf32, #tpu.memory_space<vmem>>, %arg10: memref<36x4xf32, #tpu.memory_space<vmem>>, %arg11: memref<22x8xf32, #tpu.memory_space<vmem>>, %arg12: memref<32x8xf32, #tpu.memory_space<vmem>>, %arg13: memref<16x16xf32, #tpu.memory_space<vmem>>) attributes {dimension_semantics = [], scalar_prefetch = 0 : i64, scratch_operands = 4 : i64, tpu.core_type = #tpu.core_type<tc>} {
    %cst = arith.constant 0.000000e+00 : f32
    %0 = vector.broadcast %cst : f32 to vector<1x4xf32>
    %c0 = arith.constant 0 : index
    %c0_0 = arith.constant 0 : index
    %1 = vector.load %arg10[%c0, %c0_0] : memref<36x4xf32, #tpu.memory_space<vmem>>, vector<1x4xf32>
    tpu.vector_store %arg10[%c0, %c0_0], %0 {strides = array<i32>} : memref<36x4xf32, #tpu.memory_space<vmem>>, vector<1x4xf32>,
    %cst_1 = arith.constant 0.000000e+00 : f32
    %2 = vector.broadcast %cst_1 : f32 to vector<1x4xf32>
    %c17 = arith.constant 17 : index
    %c0_2 = arith.constant 0 : index
    %3 = vector.load %arg10[%c17, %c0_2] : memref<36x4xf32, #tpu.memory_space<vmem>>, vector<1x4xf32>
    tpu.vector_store %arg10[%c17, %c0_2], %2 {strides = array<i32>} : memref<36x4xf32, #tpu.memory_space<vmem>>, vector<1x4xf32>,
    %cst_3 = arith.constant 0.000000e+00 : f32
    %4 = vector.broadcast %cst_3 : f32 to vector<1x4xf32>
    %c18 = arith.constant 18 : index
    %c0_4 = arith.constant 0 : index
    %5 = vector.load %arg10[%c18, %c0_4] : memref<36x4xf32, #tpu.memory_space<vmem>>, vector<1x4xf32>
    tpu.vector_store %arg10[%c18, %c0_4], %4 {strides = array<i32>} : memref<36x4xf32, #tpu.memory_space<vmem>>, vector<1x4xf32>,
    %cst_5 = arith.constant 0.000000e+00 : f32
    %6 = vector.broadcast %cst_5 : f32 to vector<1x4xf32>
    %c35 = arith.constant 35 : index
    %c0_6 = arith.constant 0 : index
    %7 = vector.load %arg10[%c35, %c0_6] : memref<36x4xf32, #tpu.memory_space<vmem>>, vector<1x4xf32>
    tpu.vector_store %arg10[%c35, %c0_6], %6 {strides = array<i32>} : memref<36x4xf32, #tpu.memory_space<vmem>>, vector<1x4xf32>,
    %cst_7 = arith.constant 0.000000e+00 : f32
    %8 = vector.broadcast %cst_7 : f32 to vector<1x8xf32>
    %c0_8 = arith.constant 0 : index
    %c0_9 = arith.constant 0 : index
    %9 = vector.load %arg11[%c0_8, %c0_9] : memref<22x8xf32, #tpu.memory_space<vmem>>, vector<1x8xf32>
    tpu.vector_store %arg11[%c0_8, %c0_9], %8 {strides = array<i32>} : memref<22x8xf32, #tpu.memory_space<vmem>>, vector<1x8xf32>,
    %cst_10 = arith.constant 0.000000e+00 : f32
    %10 = vector.broadcast %cst_10 : f32 to vector<2x8xf32>
    %c9 = arith.constant 9 : index
    %c0_11 = arith.constant 0 : index
    %11 = vector.load %arg11[%c9, %c0_11] : memref<22x8xf32, #tpu.memory_space<vmem>>, vector<2x8xf32>
    tpu.vector_store %arg11[%c9, %c0_11], %10 {strides = array<i32>} : memref<22x8xf32, #tpu.memory_space<vmem>>, vector<2x8xf32>,
    %cst_12 = arith.constant 0.000000e+00 : f32
    %12 = vector.broadcast %cst_12 : f32 to vector<1x8xf32>
    %c11 = arith.constant 11 : index
    %c0_13 = arith.constant 0 : index
    %13 = vector.load %arg11[%c11, %c0_13] : memref<22x8xf32, #tpu.memory_space<vmem>>, vector<1x8xf32>
    tpu.vector_store %arg11[%c11, %c0_13], %12 {strides = array<i32>} : memref<22x8xf32, #tpu.memory_space<vmem>>, vector<1x8xf32>,
    %cst_14 = arith.constant 0.000000e+00 : f32
    %14 = vector.broadcast %cst_14 : f32 to vector<2x8xf32>
    %c20 = arith.constant 20 : index
    %c0_15 = arith.constant 0 : index
    %15 = vector.load %arg11[%c20, %c0_15] : memref<22x8xf32, #tpu.memory_space<vmem>>, vector<2x8xf32>
    tpu.vector_store %arg11[%c20, %c0_15], %14 {strides = array<i32>} : memref<22x8xf32, #tpu.memory_space<vmem>>, vector<2x8xf32>,
    %c0_16 = arith.constant 0 : index
    %c0_17 = arith.constant 0 : index
    %16 = vector.load %arg0[%c0_16, %c0_17] : memref<32x4xf32, #tpu.memory_space<vmem>>, vector<32x4xf32>
    %17 = vector.extract_strided_slice %16 {offsets = [0, 0], sizes = [16, 4], strides = [1, 1]} : vector<32x4xf32> to vector<16x4xf32>
    %c1 = arith.constant 1 : index
    %c0_18 = arith.constant 0 : index
    %18 = vector.load %arg10[%c1, %c0_18] : memref<36x4xf32, #tpu.memory_space<vmem>>, vector<16x4xf32>
    tpu.vector_store %arg10[%c1, %c0_18], %17 {strides = array<i32>} : memref<36x4xf32, #tpu.memory_space<vmem>>, vector<16x4xf32>,
    %19 = vector.extract_strided_slice %16 {offsets = [16, 0], sizes = [16, 4], strides = [1, 1]} : vector<32x4xf32> to vector<16x4xf32>
    %c19 = arith.constant 19 : index
    %c0_19 = arith.constant 0 : index
    %20 = vector.load %arg10[%c19, %c0_19] : memref<36x4xf32, #tpu.memory_space<vmem>>, vector<16x4xf32>
    tpu.vector_store %arg10[%c19, %c0_19], %19 {strides = array<i32>} : memref<36x4xf32, #tpu.memory_space<vmem>>, vector<16x4xf32>,
    %c0_20 = arith.constant 0 : index
    %c0_21 = arith.constant 0 : index
    %21 = vector.load %arg10[%c0_20, %c0_21] : memref<36x4xf32, #tpu.memory_space<vmem>>, vector<16x4xf32>
    %c1_22 = arith.constant 1 : index
    %c0_23 = arith.constant 0 : index
    %22 = vector.load %arg10[%c1_22, %c0_23] : memref<36x4xf32, #tpu.memory_space<vmem>>, vector<16x4xf32>
    %c2 = arith.constant 2 : index
    %c0_24 = arith.constant 0 : index
    %23 = vector.load %arg10[%c2, %c0_24] : memref<36x4xf32, #tpu.memory_space<vmem>>, vector<16x4xf32>
    %24 = tpu.concatenate %21, %22, %23 in 1 : vector<16x4xf32>, vector<16x4xf32>, vector<16x4xf32> -> vector<16x12xf32>
    %c18_25 = arith.constant 18 : index
    %c0_26 = arith.constant 0 : index
    %25 = vector.load %arg10[%c18_25, %c0_26] : memref<36x4xf32, #tpu.memory_space<vmem>>, vector<16x4xf32>
    %c19_27 = arith.constant 19 : index
    %c0_28 = arith.constant 0 : index
    %26 = vector.load %arg10[%c19_27, %c0_28] : memref<36x4xf32, #tpu.memory_space<vmem>>, vector<16x4xf32>
    %c20_29 = arith.constant 20 : index
    %c0_30 = arith.constant 0 : index
    %27 = vector.load %arg10[%c20_29, %c0_30] : memref<36x4xf32, #tpu.memory_space<vmem>>, vector<16x4xf32>
    %28 = tpu.concatenate %25, %26, %27 in 1 : vector<16x4xf32>, vector<16x4xf32>, vector<16x4xf32> -> vector<16x12xf32>
    %29 = tpu.concatenate %24, %28 in 0 : vector<16x12xf32>, vector<16x12xf32> -> vector<32x12xf32>
    %30 = arith.truncf %29 : vector<32x12xf32> to vector<32x12xbf16>
    %c0_31 = arith.constant 0 : index
    %c0_32 = arith.constant 0 : index
    %31 = vector.load %arg1[%c0_31, %c0_32] : memref<12x8xbf16, #tpu.memory_space<vmem>>, vector<12x8xbf16>
    %cst_33 = arith.constant dense<0.000000e+00> : vector<32x8xf32>
    %32 = tpu.matmul %30, %31, %cst_33 {dimension_numbers = #tpu.dot_dimension_numbers<[1], [0], [0], [1], [0, 0, 1, 1], [], []>} : vector<32x12xbf16>, vector<12x8xbf16>, vector<32x8xf32> -> vector<32x8xf32>
    %c0_34 = arith.constant 0 : index
    %c0_35 = arith.constant 0 : index
    %33 = vector.load %arg2[%c0_34, %c0_35] : memref<1x8xf32, #tpu.memory_space<vmem>>, vector<1x8xf32>
    %34 = vector.broadcast %33 : vector<1x8xf32> to vector<32x8xf32>
    %35 = arith.addf %32, %34 : vector<32x8xf32>
    %cst_36 = arith.constant 0.000000e+00 : f32
    %36 = vector.broadcast %cst_36 : f32 to vector<32x8xf32>
    %37 = arith.maximumf %35, %36 : vector<32x8xf32>
    %c0_37 = arith.constant 0 : index
    %c0_38 = arith.constant 0 : index
    %38 = vector.load %arg12[%c0_37, %c0_38] : memref<32x8xf32, #tpu.memory_space<vmem>>, vector<32x8xf32>
    tpu.vector_store %arg12[%c0_37, %c0_38], %37 {strides = array<i32>} : memref<32x8xf32, #tpu.memory_space<vmem>>, vector<32x8xf32>,
    %c0_39 = arith.constant 0 : index
    %c0_40 = arith.constant 0 : index
    %39 = tpu.strided_load %arg12[%c0_39, %c0_40] {strides = array<i32: 2, 1>} : memref<32x8xf32, #tpu.memory_space<vmem>>, vector<16x8xf32>
    %c1_41 = arith.constant 1 : index
    %c0_42 = arith.constant 0 : index
    %40 = tpu.strided_load %arg12[%c1_41, %c0_42] {strides = array<i32: 2, 1>} : memref<32x8xf32, #tpu.memory_space<vmem>>, vector<16x8xf32>
    %41 = arith.maximumf %39, %40 : vector<16x8xf32>
    %42 = vector.extract_strided_slice %41 {offsets = [0, 0], sizes = [8, 8], strides = [1, 1]} : vector<16x8xf32> to vector<8x8xf32>
    %c1_43 = arith.constant 1 : index
    %c0_44 = arith.constant 0 : index
    %43 = vector.load %arg11[%c1_43, %c0_44] : memref<22x8xf32, #tpu.memory_space<vmem>>, vector<8x8xf32>
    tpu.vector_store %arg11[%c1_43, %c0_44], %42 {strides = array<i32>} : memref<22x8xf32, #tpu.memory_space<vmem>>, vector<8x8xf32>,
    %44 = vector.extract_strided_slice %41 {offsets = [8, 0], sizes = [8, 8], strides = [1, 1]} : vector<16x8xf32> to vector<8x8xf32>
    %c12 = arith.constant 12 : index
    %c0_45 = arith.constant 0 : index
    %45 = vector.load %arg11[%c12, %c0_45] : memref<22x8xf32, #tpu.memory_space<vmem>>, vector<8x8xf32>
    tpu.vector_store %arg11[%c12, %c0_45], %44 {strides = array<i32>} : memref<22x8xf32, #tpu.memory_space<vmem>>, vector<8x8xf32>,
    %c0_46 = arith.constant 0 : index
    %c0_47 = arith.constant 0 : index
    %46 = vector.load %arg11[%c0_46, %c0_47] : memref<22x8xf32, #tpu.memory_space<vmem>>, vector<8x8xf32>
    %c1_48 = arith.constant 1 : index
    %c0_49 = arith.constant 0 : index
    %47 = vector.load %arg11[%c1_48, %c0_49] : memref<22x8xf32, #tpu.memory_space<vmem>>, vector<8x8xf32>
    %c2_50 = arith.constant 2 : index
    %c0_51 = arith.constant 0 : index
    %48 = vector.load %arg11[%c2_50, %c0_51] : memref<22x8xf32, #tpu.memory_space<vmem>>, vector<8x8xf32>
    %c3 = arith.constant 3 : index
    %c0_52 = arith.constant 0 : index
    %49 = vector.load %arg11[%c3, %c0_52] : memref<22x8xf32, #tpu.memory_space<vmem>>, vector<8x8xf32>
    %50 = tpu.concatenate %46, %47, %48, %49 in 1 : vector<8x8xf32>, vector<8x8xf32>, vector<8x8xf32>, vector<8x8xf32> -> vector<8x32xf32>
    %c11_53 = arith.constant 11 : index
    %c0_54 = arith.constant 0 : index
    %51 = vector.load %arg11[%c11_53, %c0_54] : memref<22x8xf32, #tpu.memory_space<vmem>>, vector<8x8xf32>
    %c12_55 = arith.constant 12 : index
    %c0_56 = arith.constant 0 : index
    %52 = vector.load %arg11[%c12_55, %c0_56] : memref<22x8xf32, #tpu.memory_space<vmem>>, vector<8x8xf32>
    %c13 = arith.constant 13 : index
    %c0_57 = arith.constant 0 : index
    %53 = vector.load %arg11[%c13, %c0_57] : memref<22x8xf32, #tpu.memory_space<vmem>>, vector<8x8xf32>
    %c14 = arith.constant 14 : index
    %c0_58 = arith.constant 0 : index
    %54 = vector.load %arg11[%c14, %c0_58] : memref<22x8xf32, #tpu.memory_space<vmem>>, vector<8x8xf32>
    %55 = tpu.concatenate %51, %52, %53, %54 in 1 : vector<8x8xf32>, vector<8x8xf32>, vector<8x8xf32>, vector<8x8xf32> -> vector<8x32xf32>
    %56 = tpu.concatenate %50, %55 in 0 : vector<8x32xf32>, vector<8x32xf32> -> vector<16x32xf32>
    %57 = arith.truncf %56 : vector<16x32xf32> to vector<16x32xbf16>
    %c0_59 = arith.constant 0 : index
    %c0_60 = arith.constant 0 : index
    %58 = vector.load %arg3[%c0_59, %c0_60] : memref<32x16xbf16, #tpu.memory_space<vmem>>, vector<32x16xbf16>
    %cst_61 = arith.constant dense<0.000000e+00> : vector<16x16xf32>
    %59 = tpu.matmul %57, %58, %cst_61 {dimension_numbers = #tpu.dot_dimension_numbers<[1], [0], [0], [1], [0, 0, 1, 1], [], []>} : vector<16x32xbf16>, vector<32x16xbf16>, vector<16x16xf32> -> vector<16x16xf32>
    %c0_62 = arith.constant 0 : index
    %c0_63 = arith.constant 0 : index
    %60 = vector.load %arg4[%c0_62, %c0_63] : memref<1x16xf32, #tpu.memory_space<vmem>>, vector<1x16xf32>
    %61 = vector.broadcast %60 : vector<1x16xf32> to vector<16x16xf32>
    %62 = arith.addf %59, %61 : vector<16x16xf32>
    %cst_64 = arith.constant 0.000000e+00 : f32
    %63 = vector.broadcast %cst_64 : f32 to vector<16x16xf32>
    %64 = arith.maximumf %62, %63 : vector<16x16xf32>
    %c0_65 = arith.constant 0 : index
    %c0_66 = arith.constant 0 : index
    %65 = vector.load %arg13[%c0_65, %c0_66] : memref<16x16xf32, #tpu.memory_space<vmem>>, vector<16x16xf32>
    tpu.vector_store %arg13[%c0_65, %c0_66], %64 {strides = array<i32>} : memref<16x16xf32, #tpu.memory_space<vmem>>, vector<16x16xf32>,
    %c0_67 = arith.constant 0 : index
    %c0_68 = arith.constant 0 : index
    %66 = tpu.strided_load %arg13[%c0_67, %c0_68] {strides = array<i32: 8, 1>} : memref<16x16xf32, #tpu.memory_space<vmem>>, vector<2x16xf32>
    %c1_69 = arith.constant 1 : index
    %c0_70 = arith.constant 0 : index
    %67 = tpu.strided_load %arg13[%c1_69, %c0_70] {strides = array<i32: 8, 1>} : memref<16x16xf32, #tpu.memory_space<vmem>>, vector<2x16xf32>
    %68 = arith.maximumf %66, %67 : vector<2x16xf32>
    %c2_71 = arith.constant 2 : index
    %c0_72 = arith.constant 0 : index
    %69 = tpu.strided_load %arg13[%c2_71, %c0_72] {strides = array<i32: 8, 1>} : memref<16x16xf32, #tpu.memory_space<vmem>>, vector<2x16xf32>
    %c3_73 = arith.constant 3 : index
    %c0_74 = arith.constant 0 : index
    %70 = tpu.strided_load %arg13[%c3_73, %c0_74] {strides = array<i32: 8, 1>} : memref<16x16xf32, #tpu.memory_space<vmem>>, vector<2x16xf32>
    %71 = arith.maximumf %69, %70 : vector<2x16xf32>
    %c4 = arith.constant 4 : index
    %c0_75 = arith.constant 0 : index
    %72 = tpu.strided_load %arg13[%c4, %c0_75] {strides = array<i32: 8, 1>} : memref<16x16xf32, #tpu.memory_space<vmem>>, vector<2x16xf32>
    %c5 = arith.constant 5 : index
    %c0_76 = arith.constant 0 : index
    %73 = tpu.strided_load %arg13[%c5, %c0_76] {strides = array<i32: 8, 1>} : memref<16x16xf32, #tpu.memory_space<vmem>>, vector<2x16xf32>
    %74 = arith.maximumf %72, %73 : vector<2x16xf32>
    %c6 = arith.constant 6 : index
    %c0_77 = arith.constant 0 : index
    %75 = tpu.strided_load %arg13[%c6, %c0_77] {strides = array<i32: 8, 1>} : memref<16x16xf32, #tpu.memory_space<vmem>>, vector<2x16xf32>
    %c7 = arith.constant 7 : index
    %c0_78 = arith.constant 0 : index
    %76 = tpu.strided_load %arg13[%c7, %c0_78] {strides = array<i32: 8, 1>} : memref<16x16xf32, #tpu.memory_space<vmem>>, vector<2x16xf32>
    %77 = arith.maximumf %75, %76 : vector<2x16xf32>
    %78 = tpu.concatenate %68, %71, %74, %77 in 1 : vector<2x16xf32>, vector<2x16xf32>, vector<2x16xf32>, vector<2x16xf32> -> vector<2x64xf32>
    %79 = arith.truncf %78 : vector<2x64xf32> to vector<2x64xbf16>
    %c0_79 = arith.constant 0 : index
    %c0_80 = arith.constant 0 : index
    %80 = vector.load %arg5[%c0_79, %c0_80] : memref<64x32xbf16, #tpu.memory_space<vmem>>, vector<64x32xbf16>
    %cst_81 = arith.constant dense<0.000000e+00> : vector<2x32xf32>
    %81 = tpu.matmul %79, %80, %cst_81 {dimension_numbers = #tpu.dot_dimension_numbers<[1], [0], [0], [1], [0, 0, 1, 1], [], []>} : vector<2x64xbf16>, vector<64x32xbf16>, vector<2x32xf32> -> vector<2x32xf32>
    %c0_82 = arith.constant 0 : index
    %c0_83 = arith.constant 0 : index
    %82 = vector.load %arg6[%c0_82, %c0_83] : memref<1x32xf32, #tpu.memory_space<vmem>>, vector<1x32xf32>
    %83 = vector.broadcast %82 : vector<1x32xf32> to vector<2x32xf32>
    %84 = arith.addf %81, %83 : vector<2x32xf32>
    %cst_84 = arith.constant 0.000000e+00 : f32
    %85 = vector.broadcast %cst_84 : f32 to vector<2x32xf32>
    %86 = arith.maximumf %84, %85 : vector<2x32xf32>
    %87 = arith.truncf %86 : vector<2x32xf32> to vector<2x32xbf16>
    %c0_85 = arith.constant 0 : index
    %c0_86 = arith.constant 0 : index
    %88 = vector.load %arg7[%c0_85, %c0_86] : memref<32x3xbf16, #tpu.memory_space<vmem>>, vector<32x3xbf16>
    %cst_87 = arith.constant dense<0.000000e+00> : vector<2x3xf32>
    %89 = tpu.matmul %87, %88, %cst_87 {dimension_numbers = #tpu.dot_dimension_numbers<[1], [0], [0], [1], [0, 0, 1, 1], [], []>} : vector<2x32xbf16>, vector<32x3xbf16>, vector<2x3xf32> -> vector<2x3xf32>
    %c0_88 = arith.constant 0 : index
    %c0_89 = arith.constant 0 : index
    %90 = vector.load %arg8[%c0_88, %c0_89] : memref<1x3xf32, #tpu.memory_space<vmem>>, vector<1x3xf32>
    %91 = vector.broadcast %90 : vector<1x3xf32> to vector<2x3xf32>
    %92 = arith.addf %89, %91 : vector<2x3xf32>
    %cst_90 = arith.constant dense<0xFF800000> : vector<2xf32>
    %93 = vector.multi_reduction <maximumf>, %92, %cst_90 [1] : vector<2x3xf32> to vector<2xf32>
    %94 = vector.shape_cast %93 : vector<2xf32> to vector<2x1xf32>
    %95 = vector.broadcast %94 : vector<2x1xf32> to vector<2x3xf32>
    %96 = arith.subf %92, %95 : vector<2x3xf32>
    %97 = math.exp %96 : vector<2x3xf32>
    %cst_91 = arith.constant dense<0.000000e+00> : vector<2xf32>
    %98 = vector.multi_reduction <add>, %97, %cst_91 [1] : vector<2x3xf32> to vector<2xf32>
    %99 = vector.shape_cast %98 : vector<2xf32> to vector<2x1xf32>
    %100 = tpu.reciprocal %99 {approx = true} : vector<2x1xf32> -> vector<2x1xf32>
    %101 = vector.broadcast %100 : vector<2x1xf32> to vector<2x3xf32>
    %102 = arith.mulf %97, %101 : vector<2x3xf32>
    %c0_92 = arith.constant 0 : index
    %c0_93 = arith.constant 0 : index
    %103 = vector.load %arg9[%c0_92, %c0_93] : memref<2x3xf32, #tpu.memory_space<vmem>>, vector<2x3xf32>
    tpu.vector_store %arg9[%c0_92, %c0_93], %102 {strides = array<i32>} : memref<2x3xf32, #tpu.memory_space<vmem>>, vector<2x3xf32>,
    return
  }
}

</mosaic_0001>

<llo_original>
// kernel: tpu_custom_call.1
$region0: #{tpu_custom_call.1}
  #allocation0 [shape = 'u32[]', space=smem, size = 0x4, offset = 0x4, fixed_abs, tag = 'smem constant byte address 0x4 - core index']
  #allocation1 [shape = 'u32[72,128]{1,0:T(1,128)}', space=vmem, size = 0x9000, scoped, tag = 'internal scratch']
  #allocation2 [shape = 'f32[36,4]{1,0:T(8,128)}', space=vmem, size = 0x5000, scoped, tag = 'scratch operand']
  #allocation3 [shape = 'f32[22,8]{1,0:T(8,128)}', space=vmem, size = 0x3000, scoped, tag = 'scratch operand']
  #allocation4 [shape = 'f32[32,8]{1,0:T(8,128)}', space=vmem, size = 0x4000, scoped, tag = 'scratch operand']
  #allocation5 [shape = 'f32[16,16]{1,0:T(8,128)}', space=vmem, size = 0x2000, scoped, tag = 'scratch operand']
  %s0 = inlined_call_operand.vmem [shape: f32[32,4], index: 0, kind: input, shape index: {}]
  %s1 = inlined_call_operand.vmem [shape: bf16[12,8], index: 1, kind: input, shape index: {}]
  %s2 = inlined_call_operand.vmem [shape: f32[1,8], index: 2, kind: input, shape index: {}]
  %s3 = inlined_call_operand.vmem [shape: bf16[32,16], index: 3, kind: input, shape index: {}]
  %s4 = inlined_call_operand.vmem [shape: f32[1,16], index: 4, kind: input, shape index: {}]
  %s5 = inlined_call_operand.vmem [shape: bf16[64,32], index: 5, kind: input, shape index: {}]
  %s6 = inlined_call_operand.vmem [shape: f32[1,32], index: 6, kind: input, shape index: {}]
  %s7 = inlined_call_operand.vmem [shape: bf16[32,3], index: 7, kind: input, shape index: {}]
  %s8 = inlined_call_operand.vmem [shape: f32[1,3], index: 8, kind: input, shape index: {}]
  %s9 = inlined_call_operand.hbm [shape: f32[2,3], index: 9, kind: output, shape index: {}]
  %s10 = sld [smem:[#allocation0]]
  $region46: #{tpu_custom_call.1} parent=0
    _
  %s12 = ssub.s32 1, %s10
  %s13 = scalar_select 0, %s12, %s10
  $region1: #{tpu_custom_call.1} parent=0
    #allocation6 [shape = 'u8[1024]{0}', space=vmem, size = 0x400, scoped, tag = 'output window, operand 0, single buffered']
    #allocation7 [shape = 's32[1]{0}', space=sflag, size = 0x4, scoped, tag = 'scoped memory for tpu_custom_call.1']
    %14 = vsyncpa [#allocation7], 0
    // Predicated region
    $region2: #{tpu_custom_call.1} parent=1 // pred_check
      _
    $region3: #{tpu_custom_call.1} parent=1 // pred_check_branch
      %16 = sbr.rel (0) target = $region5
    $region4: #{tpu_custom_call.1} parent=1 // pred_region
      _
    $region5: #{tpu_custom_call.1} parent=1 // pred_fallthru
      _
    // Predicated region
    $region6: #{tpu_custom_call.1} parent=1 // pred_check
      _
    $region7: #{tpu_custom_call.1} parent=1 // pred_check_branch
      %18 = sbr.rel (0) target = $region9
    $region8: #{tpu_custom_call.1} parent=1 // pred_region
      _
    $region9: #{tpu_custom_call.1} parent=1 // pred_fallthru
      _
    // Predicated region
    $region10: #{tpu_custom_call.1} parent=1 // pred_check
      _
    $region11: #{tpu_custom_call.1} parent=1 // pred_check_branch
      %20 = sbr.rel (0) target = $region13
    $region12: #{tpu_custom_call.1} parent=1 // pred_region
      _
    $region13: #{tpu_custom_call.1} parent=1 // pred_fallthru
      _
    // Predicated region
    $region14: #{tpu_custom_call.1} parent=1 // pred_check
      _
    $region15: #{tpu_custom_call.1} parent=1 // pred_check_branch
      %22 = sbr.rel (0) target = $region17
    $region16: #{tpu_custom_call.1} parent=1 // pred_region
      _
    $region17: #{tpu_custom_call.1} parent=1 // pred_fallthru
      _
    // Predicated region
    $region18: #{tpu_custom_call.1} parent=1 // pred_check
      _
    $region19: #{tpu_custom_call.1} parent=1 // pred_check_branch
      %24 = sbr.rel (0) target = $region21
    $region20: #{tpu_custom_call.1} parent=1 // pred_region
      _
    $region21: #{tpu_custom_call.1} parent=1 // pred_fallthru
      _
    // Predicated region
    $region22: #{tpu_custom_call.1} parent=1 // pred_check
      _
    $region23: #{tpu_custom_call.1} parent=1 // pred_check_branch
      %26 = sbr.rel (0) target = $region25
    $region24: #{tpu_custom_call.1} parent=1 // pred_region
      _
    $region25: #{tpu_custom_call.1} parent=1 // pred_fallthru
      _
    // Predicated region
    $region26: #{tpu_custom_call.1} parent=1 // pred_check
      _
    $region27: #{tpu_custom_call.1} parent=1 // pred_check_branch
      %28 = sbr.rel (0) target = $region29
    $region28: #{tpu_custom_call.1} parent=1 // pred_region
      _
    $region29: #{tpu_custom_call.1} parent=1 // pred_fallthru
      _
    // Predicated region
    $region30: #{tpu_custom_call.1} parent=1 // pred_check
      _
    $region31: #{tpu_custom_call.1} parent=1 // pred_check_branch
      %30 = sbr.rel (0) target = $region33
    $region32: #{tpu_custom_call.1} parent=1 // pred_region
      _
    $region33: #{tpu_custom_call.1} parent=1 // pred_fallthru
      _
    // Predicated region
    $region34: #{tpu_custom_call.1} parent=1 // pred_check
      _
    $region35: #{tpu_custom_call.1} parent=1 // pred_check_branch
      %32 = sbr.rel (0) target = $region37
    $region36: #{tpu_custom_call.1} parent=1 // pred_region
      _
    $region37: #{tpu_custom_call.1} parent=1 // pred_fallthru
      _
    %vm34 = vcmask 24576
    %35 = vst.msk [vmem:[#allocation2] sm:$0x1] %vm34, 0.0
    %36 = vst.msk [vmem:[#allocation2 + $0x11] sm:$0x1] %vm34, 0.0
    %37 = vst.msk [vmem:[#allocation2 + $0x12] sm:$0x1] %vm34, 0.0
    %38 = vst.msk [vmem:[#allocation2 + $0x23] sm:$0x1] %vm34, 0.0
    %vm39 = vcmask 57344
    %40 = vst.msk [vmem:[#allocation3] sm:$0x1] %vm39, 0.0
    %vm41 = vcmask 58368
    %42 = vst.msk [vmem:[#allocation3 + $0x9] sm:$0x3] %vm41, 0.0
    %43 = vst.msk [vmem:[#allocation3 + $0xb] sm:$0x1] %vm39, 0.0
    %44 = vst.msk [vmem:[#allocation3 + $0x14] sm:$0x3] %vm41, 0.0
    %v45 = vld [vmem:[%s0] sm:$0xff]
    %v46 = vld [vmem:[%s0 + $0x8] sm:$0xff]
    %v47 = vld [vmem:[%s0 + $0x10] sm:$0xff]
    %v48 = vld [vmem:[%s0 + $0x18] sm:$0xff]
    %vm49 = vcmask 31744
    %50 = vst.msk [vmem:[#allocation2 + $0x1] sm:$0xff] %vm49, %v45
    %51 = vst.msk [vmem:[#allocation2 + $0x9] sm:$0xff] %vm49, %v46
    %52 = vst.msk [vmem:[#allocation2 + $0x13] sm:$0xff] %vm49, %v47
    %53 = vst.msk [vmem:[#allocation2 + $0x1b] sm:$0xff] %vm49, %v48
    %v54 = vld [vmem:[#allocation2] sm:$0xff]
    %v55 = vld [vmem:[#allocation2 + $0x8] sm:$0xff]
    %v56 = vld [vmem:[#allocation2 + $0x1] sm:$0xff]
    %v57 = vld [vmem:[#allocation2 + $0x9] sm:$0xff]
    %v58 = vld [vmem:[#allocation2 + $0x2] sm:$0xff]
    %v59 = vld [vmem:[#allocation2 + $0xa] sm:$0xff]
    %62 = vrot.lane.b32.xlu0 %v56, 4
    %v63 = vpop.permute.xlu0 %62
    %64 = vrot.lane.b32.xlu0 %v57, 4
    %v65 = vpop.permute.xlu0 %64
    %70 = vrot.lane.b32.xlu0 %v58, 8
    %v71 = vpop.permute.xlu0 %70
    %72 = vrot.lane.b32.xlu0 %v59, 8
    %v73 = vpop.permute.xlu0 %72
    %v76 = vsel %vm49, %v54, %v63
    %v77 = vsel %vm49, %v55, %v65
    %vm78 = vcmask 64512
    %v79 = vsel %vm78, %v76, %v71
    %v80 = vsel %vm78, %v77, %v73
    %v81 = vld [vmem:[#allocation2 + $0x12] sm:$0xff]
    %v82 = vld [vmem:[#allocation2 + $0x1a] sm:$0xff]
    %v83 = vld [vmem:[#allocation2 + $0x13] sm:$0xff]
    %v84 = vld [vmem:[#allocation2 + $0x1b] sm:$0xff]
    %v85 = vld [vmem:[#allocation2 + $0x14] sm:$0xff]
    %v86 = vld [vmem:[#allocation2 + $0x1c] sm:$0xff]
    %89 = vrot.lane.b32.xlu0 %v83, 4
    %v90 = vpop.permute.xlu0 %89
    %91 = vrot.lane.b32.xlu0 %v84, 4
    %v92 = vpop.permute.xlu0 %91
    %97 = vrot.lane.b32.xlu0 %v85, 8
    %v98 = vpop.permute.xlu0 %97
    %99 = vrot.lane.b32.xlu0 %v86, 8
    %v100 = vpop.permute.xlu0 %99
    %v103 = vsel %vm49, %v81, %v90
    %v104 = vsel %vm49, %v82, %v92
    %v105 = vsel %vm78, %v103, %v98
    %v106 = vsel %vm78, %v104, %v100
    %v107 = vpack.c.bf16 %v80, %v79
    %v108 = vpack.c.bf16 %v106, %v105
    %v109 = vld [vmem:[%s1] sm:$0xf]
    %v110 = vld [vmem:[%s1 + $0x4] sm:$0x3]
    %v111 = vld [vmem:[%s2] sm:$0x1]
    %v113 = vperm.slane %v111, 0
    %v117 = vunpack.c.l.b16 %v109
    %v118 = vunpack.c.l.b16 %v110
    %v119 = vpack.c.b16 %v118, %v117
    %vm120 = vcmask 97280
    %v122 = vsel %vm120, %v107, 0
    %v125 = vsel %vm120, %v108, 0
    %vm127 = vcmask 1045504
    %v129 = vsel %vm127, %v119, 0
    %131 = vmatpush.bf16.msra.mxu0 0
    %132 = vmatpush.bf16.msra.mxu0 0
    %133 = vmatpush.bf16.msra.mxu0 0
    %134 = vmatpush.bf16.msra.mxu0 0
    %135 = vmatpush.bf16.msra.mxu0 0
    %136 = vmatpush.bf16.msra.mxu0 0
    %137 = vmatpush.bf16.msra.mxu0 0
    %138 = vmatpush.bf16.msra.mxu0 %v129
    %139 = vmatmul.bf16.gmra.mxu0 %v122
    %v140 = vpop.f32.mrf.mxu0
    %v141 = vadd.f32 %v113, %v140
    %v142 = vpop.f32.mrf.mxu0
    %v143 = vadd.f32 %v113, %v142
    %144 = vmatmul.bf16.gmra.mxu0 %v125
    %v145 = vpop.f32.mrf.mxu0
    %v146 = vadd.f32 %v113, %v145
    %v147 = vpop.f32.mrf.mxu0
    %v148 = vadd.f32 %v113, %v147
    %149 = vdwg.mxu0
    %v150 = vmax.f32 %v141, 0.0
    %v151 = vmax.f32 %v143, 0.0
    %v152 = vmax.f32 %v146, 0.0
    %v153 = vmax.f32 %v148, 0.0
    %154 = vst.msk [vmem:[#allocation4] sm:$0xff] %vm78, %v150
    %155 = vst.msk [vmem:[#allocation4 + $0x8] sm:$0xff] %vm78, %v151
    %156 = vst.msk [vmem:[#allocation4 + $0x10] sm:$0xff] %vm78, %v152
    %157 = vst.msk [vmem:[#allocation4 + $0x18] sm:$0xff] %vm78, %v153
    %v158 = vld [vmem:[#allocation4] ss:$2 sm:$0xff]
    %s159 = scalar_lea.vmem [#allocation4], 16
    %v160 = vld [vmem:[%s159] ss:$2 sm:$0xff]
    %s161 = scalar_lea.vmem [#allocation4], 1
    %v162 = vld [vmem:[%s161] ss:$2 sm:$0xff]
    %s163 = scalar_lea.vmem [#allocation4], 17
    %v164 = vld [vmem:[%s163] ss:$2 sm:$0xff]
    %v165 = vmax.f32 %v158, %v162
    %v166 = vmax.f32 %v160, %v164
    %167 = vst.msk [vmem:[#allocation3 + $0x1] sm:$0xff] %vm78, %v165
    %168 = vst.msk [vmem:[#allocation3 + $0xc] sm:$0xff] %vm78, %v166
    %v169 = vld [vmem:[#allocation3] sm:$0xff]
    %v170 = vld [vmem:[#allocation3 + $0x1] sm:$0xff]
    %v171 = vld [vmem:[#allocation3 + $0x2] sm:$0xff]
    %v172 = vld [vmem:[#allocation3 + $0x3] sm:$0xff]
    %174 = vrot.lane.b32.xlu0 %v170, 8
    %v175 = vpop.permute.xlu0 %174
    %178 = vrot.lane.b32.xlu0 %v171, 16
    %v179 = vpop.permute.xlu0 %178
    %182 = vrot.lane.b32.xlu0 %v172, 24
    %v183 = vpop.permute.xlu0 %182
    %v185 = vsel %vm78, %v169, %v175
    %vm186 = vcmask 130048
    %v187 = vsel %vm186, %v185, %v179
    %vm188 = vcmask 195584
    %v189 = vsel %vm188, %v187, %v183
    %v190 = vld [vmem:[#allocation3 + $0xb] sm:$0xff]
    %v191 = vld [vmem:[#allocation3 + $0xc] sm:$0xff]
    %v192 = vld [vmem:[#allocation3 + $0xd] sm:$0xff]
    %v193 = vld [vmem:[#allocation3 + $0xe] sm:$0xff]
    %195 = vrot.lane.b32.xlu0 %v191, 8
    %v196 = vpop.permute.xlu0 %195
    %199 = vrot.lane.b32.xlu0 %v192, 16
    %v200 = vpop.permute.xlu0 %199
    %203 = vrot.lane.b32.xlu0 %v193, 24
    %v204 = vpop.permute.xlu0 %203
    %v206 = vsel %vm78, %v190, %v196
    %v207 = vsel %vm186, %v206, %v200
    %v208 = vsel %vm188, %v207, %v204
    %v209 = vpack.c.bf16 %v208, %v189
    %v210 = vld [vmem:[%s3] sm:$0xf]
    %v211 = vld [vmem:[%s3 + $0x4] sm:$0xf]
    %v212 = vld [vmem:[%s3 + $0x8] sm:$0xf]
    %v213 = vld [vmem:[%s3 + $0xc] sm:$0xf]
    %v214 = vld [vmem:[%s4] sm:$0x1]
    %v216 = vperm.slane %v214, 0
    %v222 = vunpack.c.l.b16 %v210
    %v223 = vunpack.c.l.b16 %v211
    %v224 = vunpack.c.l.b16 %v212
    %v225 = vunpack.c.l.b16 %v213
    %v226 = vpack.c.b16 %v223, %v222
    %v227 = vpack.c.b16 %v225, %v224
    %vm230 = vcmask 261120
    %v232 = vsel %vm230, %v209, 0
    %234 = vmatpush.bf16.msra.mxu0 0
    %235 = vmatpush.bf16.msra.mxu0 0
    %236 = vmatpush.bf16.msra.mxu0 0
    %237 = vmatpush.bf16.msra.mxu0 0
    %238 = vmatpush.bf16.msra.mxu0 0
    %239 = vmatpush.bf16.msra.mxu0 0
    %240 = vmatpush.bf16.msra.mxu0 %v227
    %241 = vmatpush.bf16.msra.mxu0 %v226
    %242 = vmatmul.bf16.gmra.mxu0 %v232
    %v243 = vpop.f32.mrf.mxu0
    %v244 = vadd.f32 %v216, %v243
    %v245 = vpop.f32.mrf.mxu0
    %v246 = vadd.f32 %v216, %v245
    %247 = vdwg.mxu0
    %v248 = vmax.f32 %v244, 0.0
    %v249 = vmax.f32 %v246, 0.0
    %250 = vst.msk [vmem:[#allocation5] sm:$0xff] %vm186, %v248
    %251 = vst.msk [vmem:[#allocation5 + $0x8] sm:$0xff] %vm186, %v249
    %v252 = vld [vmem:[#allocation5] ss:$8 sm:$0x3]
    %s253 = scalar_lea.vmem [#allocation5], 1
    %v254 = vld [vmem:[%s253] ss:$8 sm:$0x3]
    %v255 = vmax.f32 %v252, %v254
    %s256 = scalar_lea.vmem [#allocation5], 2
    %v257 = vld [vmem:[%s256] ss:$8 sm:$0x3]
    %s258 = scalar_lea.vmem [#allocation5], 3
    %v259 = vld [vmem:[%s258] ss:$8 sm:$0x3]
    %v260 = vmax.f32 %v257, %v259
    %s261 = scalar_lea.vmem [#allocation5], 4
    %v262 = vld [vmem:[%s261] ss:$8 sm:$0x3]
    %s263 = scalar_lea.vmem [#allocation5], 5
    %v264 = vld [vmem:[%s263] ss:$8 sm:$0x3]
    %v265 = vmax.f32 %v262, %v264
    %s266 = scalar_lea.vmem [#allocation5], 6
    %v267 = vld [vmem:[%s266] ss:$8 sm:$0x3]
    %s268 = scalar_lea.vmem [#allocation5], 7
    %v269 = vld [vmem:[%s268] ss:$8 sm:$0x3]
    %v270 = vmax.f32 %v267, %v269
    %272 = vrot.lane.b32.xlu0 %v260, 16
    %v273 = vpop.permute.xlu0 %272
    %276 = vrot.lane.b32.xlu0 %v265, 32
    %v277 = vpop.permute.xlu0 %276
    %280 = vrot.lane.b32.xlu0 %v270, 48
    %v281 = vpop.permute.xlu0 %280
    %v283 = vsel %vm186, %v255, %v273
    %v284 = vsel %vm230, %v283, %v277
    %vm285 = vcmask 392192
    %v286 = vsel %vm285, %v284, %v281
    %v287 = vpack.c.bf16 %v286, %v286
    %v288 = vld [vmem:[%s5] sm:$0xf]
    %v289 = vld [vmem:[%s5 + $0x4] sm:$0xf]
    %v290 = vld [vmem:[%s5 + $0x8] sm:$0xf]
    %v291 = vld [vmem:[%s5 + $0xc] sm:$0xf]
    %v292 = vld [vmem:[%s5 + $0x10] sm:$0xf]
    %v293 = vld [vmem:[%s5 + $0x14] sm:$0xf]
    %v294 = vld [vmem:[%s5 + $0x18] sm:$0xf]
    %v295 = vld [vmem:[%s5 + $0x1c] sm:$0xf]
    %v296 = vld [vmem:[%s6] sm:$0x1]
    %v298 = vperm.slane %v296, 0
    %v308 = vunpack.c.l.b16 %v288
    %v309 = vunpack.c.l.b16 %v289
    %v310 = vunpack.c.l.b16 %v290
    %v311 = vunpack.c.l.b16 %v291
    %v312 = vunpack.c.l.b16 %v292
    %v313 = vunpack.c.l.b16 %v293
    %v314 = vunpack.c.l.b16 %v294
    %v315 = vunpack.c.l.b16 %v295
    %v316 = vpack.c.b16 %v309, %v308
    %v317 = vpack.c.b16 %v311, %v310
    %v318 = vpack.c.b16 %v313, %v312
    %v319 = vpack.c.b16 %v315, %v314
    %vm324 = vcmask 523264
    %v326 = vsel %vm324, %v287, 0
    %328 = vmatpush.bf16.msra.mxu0 0
    %329 = vmatpush.bf16.msra.mxu0 0
    %330 = vmatpush.bf16.msra.mxu0 0
    %331 = vmatpush.bf16.msra.mxu0 0
    %332 = vmatpush.bf16.msra.mxu0 %v319
    %333 = vmatpush.bf16.msra.mxu0 %v318
    %334 = vmatpush.bf16.msra.mxu0 %v317
    %335 = vmatpush.bf16.msra.mxu0 %v316
    %336 = vmatmul.bf16.gmra.mxu0 %v326
    %v337 = vpop.f32.mrf.mxu0
    %v338 = vadd.f32 %v298, %v337
    %v339 = vpop.f32.mrf.mxu0
    %340 = vdwg.mxu0
    %v341 = vmax.f32 %v338, 0.0
    %v342 = vpack.c.bf16 %v341, %v341
    %v343 = vld [vmem:[%s7] sm:$0xf]
    %v344 = vld [vmem:[%s7 + $0x4] sm:$0xf]
    %v345 = vld [vmem:[%s7 + $0x8] sm:$0xf]
    %v346 = vld [vmem:[%s7 + $0xc] sm:$0xf]
    %v347 = vld [vmem:[%s8] sm:$0x1]
    %v349 = vperm.slane %v347, 0
    %v355 = vunpack.c.l.b16 %v343
    %v356 = vunpack.c.l.b16 %v344
    %v357 = vunpack.c.l.b16 %v345
    %v358 = vunpack.c.l.b16 %v346
    %v359 = vpack.c.b16 %v356, %v355
    %v360 = vpack.c.b16 %v358, %v357
    %v364 = vsel %vm230, %v342, 0
    %366 = vmatpush.bf16.msra.mxu0 0
    %367 = vmatpush.bf16.msra.mxu0 0
    %368 = vmatpush.bf16.msra.mxu0 0
    %369 = vmatpush.bf16.msra.mxu0 0
    %370 = vmatpush.bf16.msra.mxu0 0
    %371 = vmatpush.bf16.msra.mxu0 0
    %372 = vmatpush.bf16.msra.mxu0 %v360
    %373 = vmatpush.bf16.msra.mxu0 %v359
    %374 = vmatmul.bf16.gmra.mxu0 %v364
    %v375 = vpop.f32.mrf.mxu0
    %v376 = vadd.f32 %v349, %v375
    %v377 = vpop.f32.mrf.mxu0
    %378 = vdwg.mxu0
    %vm379 = vcmask 17408
    %v380 = vsel %vm379, %v376, -inf
    %381 = vmax.xlane.f32.xlu0 %v380
    %v382 = vpop.xlane.xlu0 %381
    %v383 = vsub.f32 %v376, %v382
    %v384 = vmul.f32 %v383, 1.442695
    %v385 = vpow.pop %v384
    %v386 = vsel %vm379, %v385, 0.0
    %387 = vadd.xlane.f32.xlu0 %v386
    %v388 = vpop.xlane.xlu0 %387
    %v389 = vrcp.pop %v388
    %v390 = vmul.f32 %v385, %v389
    %391 = vst.msk [vmem:[#allocation6] sm:$0x3] %vm379, %v390
    // Predicated region
    $region38: #{tpu_custom_call.1} parent=1 // pred_check
      _
    $region39: #{tpu_custom_call.1} parent=1 // pred_check_branch
      %393 = sbr.rel (0) target = $region41
    $region40: #{tpu_custom_call.1} parent=1 // pred_region
      %395 = vsyncadd [#allocation7], 0
      %s397 = sshll.u32 [#allocation6], 4
      %s398 = int_to_ptr.vmem [resolvable:$true] %s397
      %s399 = sshll.u32 %s9, 4
      %s400 = int_to_ptr.hbm [resolvable:$true] %s399
      %402 = dma.vmem_to_hbm [thread:$0]  %s398, 32, %s400, [#allocation7]
    $region41: #{tpu_custom_call.1} parent=1 // pred_fallthru
      _
    // Predicated region
    $region42: #{tpu_custom_call.1} parent=1 // pred_check
      _
    $region43: #{tpu_custom_call.1} parent=1 // pred_check_branch
      %404 = sbr.rel (0) target = $region45
    $region44: #{tpu_custom_call.1} parent=1 // pred_region
      %406 = dma.done [#allocation7], 32
    $region45: #{tpu_custom_call.1} parent=1 // pred_fallthru
      _
    %407 = vsyncpa [#allocation7], 1

</llo_original>
